<compile_context>
chip_gen: v6e
topology: v6e:2x2x1
jax: 0.10.0
libtpu: 0.0.40
codegen_flags: <defaults>
</compile_context>

<pallas_src>
import functools

import jax
import jax.numpy as jnp
from jax.experimental import pallas as pl
from jax.experimental.pallas import tpu as pltpu

LANE = 128  # pad hidden feature dim to one full vreg lane width


def _fused_jumpk_kernel(x_ref, a_ref, w0_ref, wstack_ref, bstack_ref, o_ref,
                        *, n_layers):
    """Fused forward over all GCN layers.  Everything resident in VMEM.

    x_ref:      (N, F_in)            node features
    a_ref:      (N, N)               dense normalized adjacency
    w0_ref:     (F_in, LANE)         layer-0 weight, zero-padded to LANE cols
    wstack_ref: (n_layers-1, LANE, LANE)  hidden-layer weights, zero-padded
    bstack_ref: (n_layers, 1, LANE)  biases, zero-padded
    o_ref:      (N, LANE)            padded output of the LAST layer
    """
    a = a_ref[...]

    # ---- Layer 0: (A @ X) @ W0 + b0, then ReLU.  F_in < LANE so contracting
    # over the small feature dim first is the cheaper MXU order.
    ax = jnp.dot(a, x_ref[...], preferred_element_type=jnp.float32)
    h = jnp.dot(ax, w0_ref[...], preferred_element_type=jnp.float32)
    h = h + bstack_ref[0]
    h = jnp.maximum(h, 0.0)

    # ---- Hidden layers 1 .. n_layers-1 (static unrolled; H stays on-chip).
    for l in range(1, n_layers):
        hw = jnp.dot(h, wstack_ref[l - 1], preferred_element_type=jnp.float32)
        h = jnp.dot(a, hw, preferred_element_type=jnp.float32) + bstack_ref[l]
        if l < n_layers - 1:          # no activation on the last layer
            h = jnp.maximum(h, 0.0)

    o_ref[...] = h.astype(o_ref.dtype)


@functools.partial(jax.jit, static_argnames=("hid_dim",))
def jumpk_gnn_forward(x, a, w0_pad, wstack_pad, bstack_pad, hid_dim):
    """Forward pass of JumpKGNN: output of the last GCN layer, (N, hid_dim)."""
    n = x.shape[0]
    n_layers = bstack_pad.shape[0]
    kernel = functools.partial(_fused_jumpk_kernel, n_layers=n_layers)
    out_pad = pl.pallas_call(
        kernel,
        out_shape=jax.ShapeDtypeStruct((n, LANE), jnp.float32),
        in_specs=[pl.BlockSpec(memory_space=pltpu.MemorySpace.VMEM)] * 5,
        out_specs=pl.BlockSpec(memory_space=pltpu.MemorySpace.VMEM),
        compiler_params=pltpu.CompilerParams(
            vmem_limit_bytes=64 * 1024 * 1024),
    )(x, a, w0_pad, wstack_pad, bstack_pad)
    # Drop the zero-padded lanes (lane-dense store inside, cheap slice outside).
    return out_pad[:, :hid_dim]


# ----------------------------------------------------------------------------
# Parameter construction (matches torch's xavier_uniform_ on Linear weight +
# zero bias), plus zero-padding of the hidden dim to LANE.
# ----------------------------------------------------------------------------
def xavier_uniform(key, fan_in, fan_out):
    bound = jnp.sqrt(6.0 / (fan_in + fan_out))
    return jax.random.uniform(
        key, (fan_in, fan_out), minval=-bound, maxval=bound, dtype=jnp.float32)


def init_params(key, input_dim, hid_dim, n_layers):
    dims = [input_dim] + [hid_dim] * n_layers
    weights, biases = [], []
    for l in range(n_layers):
        key, sub = jax.random.split(key)
        weights.append(xavier_uniform(sub, dims[l], dims[l + 1]))
        biases.append(jnp.zeros((1, dims[l + 1]), dtype=jnp.float32))
    return weights, biases


def pad_params(weights, biases, lane=LANE):
    """Zero-pad the hidden feature dim to `lane` and stack hidden layers."""
    n_layers = len(weights)
    assert n_layers > 1
    f_in, h = weights[0].shape
    w0_pad = jnp.zeros((f_in, lane), jnp.float32).at[:, :h].set(weights[0])
    wstack = jnp.zeros((n_layers - 1, lane, lane), jnp.float32)
    for i, w in enumerate(weights[1:]):
        wstack = wstack.at[i, :h, :h].set(w)
    bstack = jnp.zeros((n_layers, 1, lane), jnp.float32)
    for i, b in enumerate(biases):
        bstack = bstack.at[i, :, :h].set(b)
    return w0_pad, wstack, bstack


def reference_forward(x, a, weights, biases):
    """Pure-JAX reference (unpadded)."""
    h = x
    n_layers = len(weights)
    for l in range(n_layers):
        h = a @ (h @ weights[l]) + biases[l]
        if l < n_layers - 1:
            h = jnp.maximum(h, 0.0)
    return h


if __name__ == "__main__":
    # Small, forward-consistent shapes.
    N_NODES = 16
    INPUT_DIM = 8
    HID_DIM = 32
    N_CLASSES = 4   # self.mlp is unused in forward
    N_LAYERS = 3

    key = jax.random.PRNGKey(0)
    kx, ka, kp = jax.random.split(key, 3)

    # Node features (N, F_in).
    x = jax.random.normal(kx, (N_NODES, INPUT_DIM), dtype=jnp.float32)

    # Dense symmetric-normalized adjacency  A_hat = D^-1/2 (A + I) D^-1/2.
    adj_rand = (jax.random.uniform(ka, (N_NODES, N_NODES)) > 0.7).astype(jnp.float32)
    adj = jnp.maximum(adj_rand, adj_rand.T)
    adj = adj + jnp.eye(N_NODES, dtype=jnp.float32)
    d_inv_sqrt = 1.0 / jnp.sqrt(jnp.sum(adj, axis=1))
    a = adj * d_inv_sqrt[:, None] * d_inv_sqrt[None, :]

    weights, biases = init_params(kp, INPUT_DIM, HID_DIM, N_LAYERS)
    w0_pad, wstack_pad, bstack_pad = pad_params(weights, biases)

    out = jumpk_gnn_forward(x, a, w0_pad, wstack_pad, bstack_pad, HID_DIM)
    out = jax.block_until_ready(out)

    assert out.shape == (N_NODES, HID_DIM), out.shape
    assert jnp.all(jnp.isfinite(out))

    # Correctness check against a pure-JAX reference.
    ref = reference_forward(x, a, weights, biases)
    assert jnp.allclose(out, ref, rtol=1e-4, atol=1e-4), (
        float(jnp.max(jnp.abs(out - ref))))

    print("KERNEL_OK")
</pallas_src>

<mosaic_0001>
module attributes {stable_mosaic.version = 11 : i64} {
  func.func @_fused_jumpk_kernel(%arg0: memref<16x8xf32, #tpu.memory_space<vmem>>, %arg1: memref<16x16xf32, #tpu.memory_space<vmem>>, %arg2: memref<8x128xf32, #tpu.memory_space<vmem>>, %arg3: memref<2x128x128xf32, #tpu.memory_space<vmem>>, %arg4: memref<3x1x128xf32, #tpu.memory_space<vmem>>, %arg5: memref<16x128xf32, #tpu.memory_space<vmem>>) attributes {dimension_semantics = [], scalar_prefetch = 0 : i64, scratch_operands = 0 : i64, tpu.core_type = #tpu.core_type<tc>} {
    %c0 = arith.constant 0 : index
    %c0_0 = arith.constant 0 : index
    %0 = vector.load %arg1[%c0, %c0_0] : memref<16x16xf32, #tpu.memory_space<vmem>>, vector<16x16xf32>
    %c0_1 = arith.constant 0 : index
    %c0_2 = arith.constant 0 : index
    %1 = vector.load %arg0[%c0_1, %c0_2] : memref<16x8xf32, #tpu.memory_space<vmem>>, vector<16x8xf32>
    %cst = arith.constant dense<0.000000e+00> : vector<16x8xf32>
    %2 = tpu.matmul %0, %1, %cst {dimension_numbers = #tpu.dot_dimension_numbers<[1], [0], [0], [1], [0, 0, 1, 1], [], []>} : vector<16x16xf32>, vector<16x8xf32>, vector<16x8xf32> -> vector<16x8xf32>
    %c0_3 = arith.constant 0 : index
    %c0_4 = arith.constant 0 : index
    %3 = vector.load %arg2[%c0_3, %c0_4] : memref<8x128xf32, #tpu.memory_space<vmem>>, vector<8x128xf32>
    %cst_5 = arith.constant dense<0.000000e+00> : vector<16x128xf32>
    %4 = tpu.matmul %2, %3, %cst_5 {dimension_numbers = #tpu.dot_dimension_numbers<[1], [0], [0], [1], [0, 0, 1, 1], [], []>} : vector<16x8xf32>, vector<8x128xf32>, vector<16x128xf32> -> vector<16x128xf32>
    %c0_6 = arith.constant 0 : index
    %c0_7 = arith.constant 0 : index
    %c0_8 = arith.constant 0 : index
    %5 = vector.load %arg4[%c0_6, %c0_7, %c0_8] : memref<3x1x128xf32, #tpu.memory_space<vmem>>, vector<1x1x128xf32>
    %6 = vector.shape_cast %5 : vector<1x1x128xf32> to vector<1x128xf32>
    %7 = vector.broadcast %6 : vector<1x128xf32> to vector<16x128xf32>
    %8 = arith.addf %4, %7 : vector<16x128xf32>
    %cst_9 = arith.constant 0.000000e+00 : f32
    %9 = vector.broadcast %cst_9 : f32 to vector<16x128xf32>
    %10 = arith.maximumf %8, %9 : vector<16x128xf32>
    %c0_10 = arith.constant 0 : index
    %c0_11 = arith.constant 0 : index
    %c0_12 = arith.constant 0 : index
    %11 = vector.load %arg3[%c0_10, %c0_11, %c0_12] : memref<2x128x128xf32, #tpu.memory_space<vmem>>, vector<1x128x128xf32>
    %12 = vector.shape_cast %11 : vector<1x128x128xf32> to vector<128x128xf32>
    %cst_13 = arith.constant dense<0.000000e+00> : vector<16x128xf32>
    %13 = tpu.matmul %10, %12, %cst_13 {dimension_numbers = #tpu.dot_dimension_numbers<[1], [0], [0], [1], [0, 0, 1, 1], [], []>} : vector<16x128xf32>, vector<128x128xf32>, vector<16x128xf32> -> vector<16x128xf32>
    %cst_14 = arith.constant dense<0.000000e+00> : vector<16x128xf32>
    %14 = tpu.matmul %0, %13, %cst_14 {dimension_numbers = #tpu.dot_dimension_numbers<[1], [0], [0], [1], [0, 0, 1, 1], [], []>} : vector<16x16xf32>, vector<16x128xf32>, vector<16x128xf32> -> vector<16x128xf32>
    %c1 = arith.constant 1 : index
    %c0_15 = arith.constant 0 : index
    %c0_16 = arith.constant 0 : index
    %15 = vector.load %arg4[%c1, %c0_15, %c0_16] : memref<3x1x128xf32, #tpu.memory_space<vmem>>, vector<1x1x128xf32>
    %16 = vector.shape_cast %15 : vector<1x1x128xf32> to vector<1x128xf32>
    %17 = vector.broadcast %16 : vector<1x128xf32> to vector<16x128xf32>
    %18 = arith.addf %14, %17 : vector<16x128xf32>
    %cst_17 = arith.constant 0.000000e+00 : f32
    %19 = vector.broadcast %cst_17 : f32 to vector<16x128xf32>
    %20 = arith.maximumf %18, %19 : vector<16x128xf32>
    %c1_18 = arith.constant 1 : index
    %c0_19 = arith.constant 0 : index
    %c0_20 = arith.constant 0 : index
    %21 = vector.load %arg3[%c1_18, %c0_19, %c0_20] : memref<2x128x128xf32, #tpu.memory_space<vmem>>, vector<1x128x128xf32>
    %22 = vector.shape_cast %21 : vector<1x128x128xf32> to vector<128x128xf32>
    %cst_21 = arith.constant dense<0.000000e+00> : vector<16x128xf32>
    %23 = tpu.matmul %20, %22, %cst_21 {dimension_numbers = #tpu.dot_dimension_numbers<[1], [0], [0], [1], [0, 0, 1, 1], [], []>} : vector<16x128xf32>, vector<128x128xf32>, vector<16x128xf32> -> vector<16x128xf32>
    %cst_22 = arith.constant dense<0.000000e+00> : vector<16x128xf32>
    %24 = tpu.matmul %0, %23, %cst_22 {dimension_numbers = #tpu.dot_dimension_numbers<[1], [0], [0], [1], [0, 0, 1, 1], [], []>} : vector<16x16xf32>, vector<16x128xf32>, vector<16x128xf32> -> vector<16x128xf32>
    %c2 = arith.constant 2 : index
    %c0_23 = arith.constant 0 : index
    %c0_24 = arith.constant 0 : index
    %25 = vector.load %arg4[%c2, %c0_23, %c0_24] : memref<3x1x128xf32, #tpu.memory_space<vmem>>, vector<1x1x128xf32>
    %26 = vector.shape_cast %25 : vector<1x1x128xf32> to vector<1x128xf32>
    %27 = vector.broadcast %26 : vector<1x128xf32> to vector<16x128xf32>
    %28 = arith.addf %24, %27 : vector<16x128xf32>
    %c0_25 = arith.constant 0 : index
    %c0_26 = arith.constant 0 : index
    %29 = vector.load %arg5[%c0_25, %c0_26] : memref<16x128xf32, #tpu.memory_space<vmem>>, vector<16x128xf32>
    tpu.vector_store %arg5[%c0_25, %c0_26], %28 {strides = array<i32>} : memref<16x128xf32, #tpu.memory_space<vmem>>, vector<16x128xf32>,
    return
  }
}

</mosaic_0001>

<llo_original>
// kernel: jumpk_gnn_forward.1
$region0: #{jumpk_gnn_forward.1}
  #allocation0 [shape = 'u32[]', space=smem, size = 0x4, offset = 0x4, fixed_abs, tag = 'smem constant byte address 0x4 - core index']
  #allocation1 [shape = 'u32[144,128]{1,0:T(1,128)}', space=vmem, size = 0x12000, scoped, tag = 'internal scratch']
  %s0 = inlined_call_operand.vmem [shape: f32[16,8], index: 0, kind: input, shape index: {}]
  %s1 = inlined_call_operand.vmem [shape: f32[16,16], index: 1, kind: input, shape index: {}]
  %s2 = inlined_call_operand.vmem [shape: f32[8,128], index: 2, kind: input, shape index: {}]
  %s3 = inlined_call_operand.hbm [shape: f32[2,128,128], index: 3, kind: input, shape index: {}]
  %s4 = inlined_call_operand.vmem [shape: f32[3,1,128], index: 4, kind: input, shape index: {}]
  %s5 = inlined_call_operand.hbm [shape: f32[16,128], index: 5, kind: output, shape index: {}]
  %s6 = sld [smem:[#allocation0]]
  $region34: #{jumpk_gnn_forward.1} parent=0
    _
  %s8 = ssub.s32 1, %s6
  %s9 = scalar_select 0, %s8, %s6
  $region1: #{jumpk_gnn_forward.1} parent=0
    #allocation2 [shape = 'u8[131072]{0}', space=vmem, size = 0x20000, scoped, tag = 'input window, operand 3, single buffered']
    #allocation3 [shape = 's32[1]{0}', space=sflag, size = 0x4, scoped, tag = 'scoped memory for jumpk_gnn_forward.1']
    #allocation4 [shape = 's32[1]{0}', space=sflag, size = 0x4, scoped, tag = 'scoped memory for jumpk_gnn_forward.1']
    #allocation5 [shape = 'u8[8192]{0}', space=vmem, size = 0x2000, scoped, tag = 'output window, operand 0, single buffered']
    %10 = vsyncpa [#allocation3], 0
    %11 = vsyncpa [#allocation4], 0
    // Predicated region
    $region2: #{jumpk_gnn_forward.1} parent=1 // pred_check
      _
    $region3: #{jumpk_gnn_forward.1} parent=1 // pred_check_branch
      %13 = sbr.rel (0) target = $region5
    $region4: #{jumpk_gnn_forward.1} parent=1 // pred_region
      _
    $region5: #{jumpk_gnn_forward.1} parent=1 // pred_fallthru
      _
    // Predicated region
    $region6: #{jumpk_gnn_forward.1} parent=1 // pred_check
      _
    $region7: #{jumpk_gnn_forward.1} parent=1 // pred_check_branch
      %15 = sbr.rel (0) target = $region9
    $region8: #{jumpk_gnn_forward.1} parent=1 // pred_region
      _
    $region9: #{jumpk_gnn_forward.1} parent=1 // pred_fallthru
      _
    // Predicated region
    $region10: #{jumpk_gnn_forward.1} parent=1 // pred_check
      _
    $region11: #{jumpk_gnn_forward.1} parent=1 // pred_check_branch
      %17 = sbr.rel (0) target = $region13
    $region12: #{jumpk_gnn_forward.1} parent=1 // pred_region
      _
    $region13: #{jumpk_gnn_forward.1} parent=1 // pred_fallthru
      _
    // Predicated region
    $region14: #{jumpk_gnn_forward.1} parent=1 // pred_check
      _
    $region15: #{jumpk_gnn_forward.1} parent=1 // pred_check_branch
      %19 = sbr.rel (0) target = $region17
    $region16: #{jumpk_gnn_forward.1} parent=1 // pred_region
      %s21 = ssub.s32 4096, 4096
      %22 = vsyncadd [#allocation3], %s21
      %s23 = sshll.u32 [#allocation2], 4
      %s24 = int_to_ptr.vmem [resolvable:$true] %s23
      %29 = dma.hbm_to_vmem [thread:$0]  %s3, 4096, %s24, [#allocation3], 128, 128, 8
    $region17: #{jumpk_gnn_forward.1} parent=1 // pred_fallthru
      _
    // Predicated region
    $region18: #{jumpk_gnn_forward.1} parent=1 // pred_check
      _
    $region19: #{jumpk_gnn_forward.1} parent=1 // pred_check_branch
      %31 = sbr.rel (0) target = $region21
    $region20: #{jumpk_gnn_forward.1} parent=1 // pred_region
      _
    $region21: #{jumpk_gnn_forward.1} parent=1 // pred_fallthru
      _
    // Predicated region
    $region22: #{jumpk_gnn_forward.1} parent=1 // pred_check
      _
    $region23: #{jumpk_gnn_forward.1} parent=1 // pred_check_branch
      %33 = sbr.rel (0) target = $region25
    $region24: #{jumpk_gnn_forward.1} parent=1 // pred_region
      %34 = dma.done [#allocation3], 4096
    $region25: #{jumpk_gnn_forward.1} parent=1 // pred_fallthru
      _
    %v35 = vld [vmem:[%s1] sm:$0xff]
    %v36 = vld [vmem:[%s1 + $0x8] sm:$0xff]
    %v37 = vld [vmem:[%s0] sm:$0xff]
    %v38 = vld [vmem:[%s0 + $0x8] sm:$0xff]
    %vm39 = vcmask 130048
    %v41 = vsel %vm39, %v35, 0
    %v44 = vsel %vm39, %v36, 0
    %46 = vmatprep.subr.mxu0 0.0
    %47 = vmatpush1.msra.mxu0 0.0
    %48 = vmatprep.subr.mxu0 0.0
    %49 = vmatpush1.msra.mxu0 0.0
    %50 = vmatprep.subr.mxu0 0.0
    %51 = vmatpush1.msra.mxu0 0.0
    %52 = vmatprep.subr.mxu0 0.0
    %53 = vmatpush1.msra.mxu0 0.0
    %54 = vmatprep.subr.mxu0 0.0
    %55 = vmatpush1.msra.mxu0 0.0
    %56 = vmatprep.subr.mxu0 0.0
    %57 = vmatpush1.msra.mxu0 0.0
    %58 = vmatprep.subr.mxu0 0.0
    %59 = vmatpush1.msra.mxu0 0.0
    %60 = vmatprep.subr.mxu0 0.0
    %61 = vmatpush1.msra.mxu0 0.0
    %62 = vmatprep.subr.mxu0 0.0
    %63 = vmatpush1.msra.mxu0 0.0
    %64 = vmatprep.subr.mxu0 0.0
    %65 = vmatpush1.msra.mxu0 0.0
    %66 = vmatprep.subr.mxu0 0.0
    %67 = vmatpush1.msra.mxu0 0.0
    %68 = vmatprep.subr.mxu0 0.0
    %69 = vmatpush1.msra.mxu0 0.0
    %70 = vmatprep.subr.mxu0 0.0
    %71 = vmatpush1.msra.mxu0 0.0
    %72 = vmatprep.subr.mxu0 0.0
    %73 = vmatpush1.msra.mxu0 0.0
    %74 = vmatprep.subr.mxu0 0.0
    %75 = vmatpush1.msra.mxu0 %v38
    %76 = vmatprep.subr.mxu0 0.0
    %77 = vmatpush1.msra.mxu0 %v37
    %78 = vmatprep.subr.mxu0 0.0
    %79 = vmatpush2.msra.mxu0 0.0
    %80 = vmatprep.subr.mxu0 0.0
    %81 = vmatpush2.msra.mxu0 0.0
    %82 = vmatprep.subr.mxu0 0.0
    %83 = vmatpush2.msra.mxu0 0.0
    %84 = vmatprep.subr.mxu0 0.0
    %85 = vmatpush2.msra.mxu0 0.0
    %86 = vmatprep.subr.mxu0 0.0
    %87 = vmatpush2.msra.mxu0 0.0
    %88 = vmatprep.subr.mxu0 0.0
    %89 = vmatpush2.msra.mxu0 0.0
    %90 = vmatprep.subr.mxu0 0.0
    %91 = vmatpush2.msra.mxu0 0.0
    %92 = vmatprep.subr.mxu0 0.0
    %93 = vmatpush2.msra.mxu0 0.0
    %94 = vmatprep.subr.mxu0 0.0
    %95 = vmatpush2.msra.mxu0 0.0
    %96 = vmatprep.subr.mxu0 0.0
    %97 = vmatpush2.msra.mxu0 0.0
    %98 = vmatprep.subr.mxu0 0.0
    %99 = vmatpush2.msra.mxu0 0.0
    %100 = vmatprep.subr.mxu0 0.0
    %101 = vmatpush2.msra.mxu0 0.0
    %102 = vmatprep.subr.mxu0 0.0
    %103 = vmatpush2.msra.mxu0 0.0
    %104 = vmatprep.subr.mxu0 0.0
    %105 = vmatpush2.msra.mxu0 0.0
    %106 = vmatprep.subr.mxu0 0.0
    %107 = vmatpush2.msra.mxu0 0.0
    %108 = vmatprep.subr.mxu0 0.0
    %109 = vmatpush2.msra.mxu0 0.0
    %110 = vmatprep.mubr.f32.mxu0 0.0
    %111 = vmatmul.mubr.f32.gmra.mxu0 %v41
    %v112 = vpop.f32.mrf.mxu0
    %v113 = vadd.f32 0.0, %v112
    %v114 = vpop.f32.mrf.mxu0
    %115 = vmatprep.mubr.f32.mxu0 0.0
    %116 = vmatmul.mubr.f32.gmra.mxu0 %v44
    %v117 = vpop.f32.mrf.mxu0
    %v118 = vadd.f32 0.0, %v117
    %v119 = vpop.f32.mrf.mxu0
    %120 = vdwg.mxu0
    %v121 = vld [vmem:[%s2] sm:$0xff]
    %v122 = vld [vmem:[%s4] sm:$0x1]
    %v124 = vlaneseq
    %v125 = vshrl.u32 %v124, 7
    %v126 = vsub.s32 0, %v125
    %v127 = vrot.slane %v122, %v126
    %vm129 = vcmask 64512
    %v131 = vsel %vm129, %v113, 0
    %v134 = vsel %vm129, %v118, 0
    %136 = vmatprep.subr.mxu0 0.0
    %137 = vmatpush1.msra.mxu0 0.0
    %138 = vmatprep.subr.mxu0 0.0
    %139 = vmatpush1.msra.mxu0 0.0
    %140 = vmatprep.subr.mxu0 0.0
    %141 = vmatpush1.msra.mxu0 0.0
    %142 = vmatprep.subr.mxu0 0.0
    %143 = vmatpush1.msra.mxu0 0.0
    %144 = vmatprep.subr.mxu0 0.0
    %145 = vmatpush1.msra.mxu0 0.0
    %146 = vmatprep.subr.mxu0 0.0
    %147 = vmatpush1.msra.mxu0 0.0
    %148 = vmatprep.subr.mxu0 0.0
    %149 = vmatpush1.msra.mxu0 0.0
    %150 = vmatprep.subr.mxu0 0.0
    %151 = vmatpush1.msra.mxu0 0.0
    %152 = vmatprep.subr.mxu0 0.0
    %153 = vmatpush1.msra.mxu0 0.0
    %154 = vmatprep.subr.mxu0 0.0
    %155 = vmatpush1.msra.mxu0 0.0
    %156 = vmatprep.subr.mxu0 0.0
    %157 = vmatpush1.msra.mxu0 0.0
    %158 = vmatprep.subr.mxu0 0.0
    %159 = vmatpush1.msra.mxu0 0.0
    %160 = vmatprep.subr.mxu0 0.0
    %161 = vmatpush1.msra.mxu0 0.0
    %162 = vmatprep.subr.mxu0 0.0
    %163 = vmatpush1.msra.mxu0 0.0
    %164 = vmatprep.subr.mxu0 0.0
    %165 = vmatpush1.msra.mxu0 0.0
    %166 = vmatprep.subr.mxu0 0.0
    %167 = vmatpush1.msra.mxu0 %v121
    %168 = vmatprep.subr.mxu0 0.0
    %169 = vmatpush2.msra.mxu0 0.0
    %170 = vmatprep.subr.mxu0 0.0
    %171 = vmatpush2.msra.mxu0 0.0
    %172 = vmatprep.subr.mxu0 0.0
    %173 = vmatpush2.msra.mxu0 0.0
    %174 = vmatprep.subr.mxu0 0.0
    %175 = vmatpush2.msra.mxu0 0.0
    %176 = vmatprep.subr.mxu0 0.0
    %177 = vmatpush2.msra.mxu0 0.0
    %178 = vmatprep.subr.mxu0 0.0
    %179 = vmatpush2.msra.mxu0 0.0
    %180 = vmatprep.subr.mxu0 0.0
    %181 = vmatpush2.msra.mxu0 0.0
    %182 = vmatprep.subr.mxu0 0.0
    %183 = vmatpush2.msra.mxu0 0.0
    %184 = vmatprep.subr.mxu0 0.0
    %185 = vmatpush2.msra.mxu0 0.0
    %186 = vmatprep.subr.mxu0 0.0
    %187 = vmatpush2.msra.mxu0 0.0
    %188 = vmatprep.subr.mxu0 0.0
    %189 = vmatpush2.msra.mxu0 0.0
    %190 = vmatprep.subr.mxu0 0.0
    %191 = vmatpush2.msra.mxu0 0.0
    %192 = vmatprep.subr.mxu0 0.0
    %193 = vmatpush2.msra.mxu0 0.0
    %194 = vmatprep.subr.mxu0 0.0
    %195 = vmatpush2.msra.mxu0 0.0
    %196 = vmatprep.subr.mxu0 0.0
    %197 = vmatpush2.msra.mxu0 0.0
    %198 = vmatprep.subr.mxu0 0.0
    %199 = vmatpush2.msra.mxu0 0.0
    %200 = vmatprep.mubr.f32.mxu0 0.0
    %201 = vmatmul.mubr.f32.gmra.mxu0 %v131
    %v202 = vpop.f32.mrf.mxu0
    %v203 = vadd.f32 %v127, %v202
    %v204 = vpop.f32.mrf.mxu0
    %205 = vmatprep.mubr.f32.mxu0 0.0
    %206 = vmatmul.mubr.f32.gmra.mxu0 %v134
    %v207 = vpop.f32.mrf.mxu0
    %v208 = vadd.f32 %v127, %v207
    %v209 = vpop.f32.mrf.mxu0
    %210 = vdwg.mxu0
    %v211 = vmax.f32 %v203, 0.0
    %v212 = vmax.f32 %v208, 0.0
    %v213 = vld [vmem:[#allocation2] sm:$0xff]
    %v214 = vld [vmem:[#allocation2 + $0x8] sm:$0xff]
    %v215 = vld [vmem:[#allocation2 + $0x10] sm:$0xff]
    %v216 = vld [vmem:[#allocation2 + $0x18] sm:$0xff]
    %v217 = vld [vmem:[#allocation2 + $0x20] sm:$0xff]
    %v218 = vld [vmem:[#allocation2 + $0x28] sm:$0xff]
    %v219 = vld [vmem:[#allocation2 + $0x30] sm:$0xff]
    %v220 = vld [vmem:[#allocation2 + $0x38] sm:$0xff]
    %v221 = vld [vmem:[#allocation2 + $0x40] sm:$0xff]
    %v222 = vld [vmem:[#allocation2 + $0x48] sm:$0xff]
    %v223 = vld [vmem:[#allocation2 + $0x50] sm:$0xff]
    %v224 = vld [vmem:[#allocation2 + $0x58] sm:$0xff]
    %v225 = vld [vmem:[#allocation2 + $0x60] sm:$0xff]
    %v226 = vld [vmem:[#allocation2 + $0x68] sm:$0xff]
    %v227 = vld [vmem:[#allocation2 + $0x70] sm:$0xff]
    %v228 = vld [vmem:[#allocation2 + $0x78] sm:$0xff]
    %229 = vmatprep.subr.mxu0 0.0
    %230 = vmatpush1.msra.mxu0 %v228
    %231 = vmatprep.subr.mxu0 0.0
    %232 = vmatpush1.msra.mxu0 %v227
    %233 = vmatprep.subr.mxu0 0.0
    %234 = vmatpush1.msra.mxu0 %v226
    %235 = vmatprep.subr.mxu0 0.0
    %236 = vmatpush1.msra.mxu0 %v225
    %237 = vmatprep.subr.mxu0 0.0
    %238 = vmatpush1.msra.mxu0 %v224
    %239 = vmatprep.subr.mxu0 0.0
    %240 = vmatpush1.msra.mxu0 %v223
    %241 = vmatprep.subr.mxu0 0.0
    %242 = vmatpush1.msra.mxu0 %v222
    %243 = vmatprep.subr.mxu0 0.0
    %244 = vmatpush1.msra.mxu0 %v221
    %245 = vmatprep.subr.mxu0 0.0
    %246 = vmatpush1.msra.mxu0 %v220
    %247 = vmatprep.subr.mxu0 0.0
    %248 = vmatpush1.msra.mxu0 %v219
    %249 = vmatprep.subr.mxu0 0.0
    %250 = vmatpush1.msra.mxu0 %v218
    %251 = vmatprep.subr.mxu0 0.0
    %252 = vmatpush1.msra.mxu0 %v217
    %253 = vmatprep.subr.mxu0 0.0
    %254 = vmatpush1.msra.mxu0 %v216
    %255 = vmatprep.subr.mxu0 0.0
    %256 = vmatpush1.msra.mxu0 %v215
    %257 = vmatprep.subr.mxu0 0.0
    %258 = vmatpush1.msra.mxu0 %v214
    %259 = vmatprep.subr.mxu0 0.0
    %260 = vmatpush1.msra.mxu0 %v213
    %261 = vmatprep.subr.mxu0 0.0
    %262 = vmatpush2.msra.mxu0 0.0
    %263 = vmatprep.subr.mxu0 0.0
    %264 = vmatpush2.msra.mxu0 0.0
    %265 = vmatprep.subr.mxu0 0.0
    %266 = vmatpush2.msra.mxu0 0.0
    %267 = vmatprep.subr.mxu0 0.0
    %268 = vmatpush2.msra.mxu0 0.0
    %269 = vmatprep.subr.mxu0 0.0
    %270 = vmatpush2.msra.mxu0 0.0
    %271 = vmatprep.subr.mxu0 0.0
    %272 = vmatpush2.msra.mxu0 0.0
    %273 = vmatprep.subr.mxu0 0.0
    %274 = vmatpush2.msra.mxu0 0.0
    %275 = vmatprep.subr.mxu0 0.0
    %276 = vmatpush2.msra.mxu0 0.0
    %277 = vmatprep.subr.mxu0 0.0
    %278 = vmatpush2.msra.mxu0 0.0
    %279 = vmatprep.subr.mxu0 0.0
    %280 = vmatpush2.msra.mxu0 0.0
    %281 = vmatprep.subr.mxu0 0.0
    %282 = vmatpush2.msra.mxu0 0.0
    %283 = vmatprep.subr.mxu0 0.0
    %284 = vmatpush2.msra.mxu0 0.0
    %285 = vmatprep.subr.mxu0 0.0
    %286 = vmatpush2.msra.mxu0 0.0
    %287 = vmatprep.subr.mxu0 0.0
    %288 = vmatpush2.msra.mxu0 0.0
    %289 = vmatprep.subr.mxu0 0.0
    %290 = vmatpush2.msra.mxu0 0.0
    %291 = vmatprep.subr.mxu0 0.0
    %292 = vmatpush2.msra.mxu0 0.0
    %293 = vmatprep.mubr.f32.mxu0 0.0
    %294 = vmatmul.mubr.f32.gmra.mxu0 %v211
    %v295 = vpop.f32.mrf.mxu0
    %v296 = vadd.f32 0.0, %v295
    %v297 = vpop.f32.mrf.mxu0
    %298 = vmatprep.mubr.f32.mxu0 0.0
    %299 = vmatmul.mubr.f32.gmra.mxu0 %v212
    %v300 = vpop.f32.mrf.mxu0
    %v301 = vadd.f32 0.0, %v300
    %v302 = vpop.f32.mrf.mxu0
    %303 = vdwg.mxu0
    %s304 = scalar_lea.vmem %s4, 1
    %v305 = vld [vmem:[%s304] sm:$0x1]
    %v307 = vlaneseq
    %v308 = vshrl.u32 %v307, 7
    %v309 = vsub.s32 0, %v308
    %v310 = vrot.slane %v305, %v309
    %312 = vmatprep.subr.mxu0 0.0
    %313 = vmatpush1.msra.mxu0 0.0
    %314 = vmatprep.subr.mxu0 0.0
    %315 = vmatpush1.msra.mxu0 0.0
    %316 = vmatprep.subr.mxu0 0.0
    %317 = vmatpush1.msra.mxu0 0.0
    %318 = vmatprep.subr.mxu0 0.0
    %319 = vmatpush1.msra.mxu0 0.0
    %320 = vmatprep.subr.mxu0 0.0
    %321 = vmatpush1.msra.mxu0 0.0
    %322 = vmatprep.subr.mxu0 0.0
    %323 = vmatpush1.msra.mxu0 0.0
    %324 = vmatprep.subr.mxu0 0.0
    %325 = vmatpush1.msra.mxu0 0.0
    %326 = vmatprep.subr.mxu0 0.0
    %327 = vmatpush1.msra.mxu0 0.0
    %328 = vmatprep.subr.mxu0 0.0
    %329 = vmatpush1.msra.mxu0 0.0
    %330 = vmatprep.subr.mxu0 0.0
    %331 = vmatpush1.msra.mxu0 0.0
    %332 = vmatprep.subr.mxu0 0.0
    %333 = vmatpush1.msra.mxu0 0.0
    %334 = vmatprep.subr.mxu0 0.0
    %335 = vmatpush1.msra.mxu0 0.0
    %336 = vmatprep.subr.mxu0 0.0
    %337 = vmatpush1.msra.mxu0 0.0
    %338 = vmatprep.subr.mxu0 0.0
    %339 = vmatpush1.msra.mxu0 0.0
    %340 = vmatprep.subr.mxu0 0.0
    %341 = vmatpush1.msra.mxu0 %v301
    %342 = vmatprep.subr.mxu0 0.0
    %343 = vmatpush1.msra.mxu0 %v296
    %344 = vmatprep.subr.mxu0 0.0
    %345 = vmatpush2.msra.mxu0 0.0
    %346 = vmatprep.subr.mxu0 0.0
    %347 = vmatpush2.msra.mxu0 0.0
    %348 = vmatprep.subr.mxu0 0.0
    %349 = vmatpush2.msra.mxu0 0.0
    %350 = vmatprep.subr.mxu0 0.0
    %351 = vmatpush2.msra.mxu0 0.0
    %352 = vmatprep.subr.mxu0 0.0
    %353 = vmatpush2.msra.mxu0 0.0
    %354 = vmatprep.subr.mxu0 0.0
    %355 = vmatpush2.msra.mxu0 0.0
    %356 = vmatprep.subr.mxu0 0.0
    %357 = vmatpush2.msra.mxu0 0.0
    %358 = vmatprep.subr.mxu0 0.0
    %359 = vmatpush2.msra.mxu0 0.0
    %360 = vmatprep.subr.mxu0 0.0
    %361 = vmatpush2.msra.mxu0 0.0
    %362 = vmatprep.subr.mxu0 0.0
    %363 = vmatpush2.msra.mxu0 0.0
    %364 = vmatprep.subr.mxu0 0.0
    %365 = vmatpush2.msra.mxu0 0.0
    %366 = vmatprep.subr.mxu0 0.0
    %367 = vmatpush2.msra.mxu0 0.0
    %368 = vmatprep.subr.mxu0 0.0
    %369 = vmatpush2.msra.mxu0 0.0
    %370 = vmatprep.subr.mxu0 0.0
    %371 = vmatpush2.msra.mxu0 0.0
    %372 = vmatprep.subr.mxu0 0.0
    %373 = vmatpush2.msra.mxu0 0.0
    %374 = vmatprep.subr.mxu0 0.0
    %375 = vmatpush2.msra.mxu0 0.0
    %376 = vmatprep.mubr.f32.mxu0 0.0
    %377 = vmatmul.mubr.f32.gmra.mxu0 %v41
    %v378 = vpop.f32.mrf.mxu0
    %v379 = vadd.f32 %v310, %v378
    %v380 = vpop.f32.mrf.mxu0
    %381 = vmatprep.mubr.f32.mxu0 0.0
    %382 = vmatmul.mubr.f32.gmra.mxu0 %v44
    %v383 = vpop.f32.mrf.mxu0
    %v384 = vadd.f32 %v310, %v383
    %v385 = vpop.f32.mrf.mxu0
    %386 = vdwg.mxu0
    %v387 = vmax.f32 %v379, 0.0
    %v388 = vmax.f32 %v384, 0.0
    %s389 = scalar_lea.vmem [#allocation2], 128
    %v390 = vld [vmem:[%s389] sm:$0xff]
    %v391 = vld [vmem:[%s389 + $0x8] sm:$0xff]
    %v392 = vld [vmem:[%s389 + $0x10] sm:$0xff]
    %v393 = vld [vmem:[%s389 + $0x18] sm:$0xff]
    %v394 = vld [vmem:[%s389 + $0x20] sm:$0xff]
    %v395 = vld [vmem:[%s389 + $0x28] sm:$0xff]
    %v396 = vld [vmem:[%s389 + $0x30] sm:$0xff]
    %v397 = vld [vmem:[%s389 + $0x38] sm:$0xff]
    %v398 = vld [vmem:[%s389 + $0x40] sm:$0xff]
    %v399 = vld [vmem:[%s389 + $0x48] sm:$0xff]
    %v400 = vld [vmem:[%s389 + $0x50] sm:$0xff]
    %v401 = vld [vmem:[%s389 + $0x58] sm:$0xff]
    %v402 = vld [vmem:[%s389 + $0x60] sm:$0xff]
    %v403 = vld [vmem:[%s389 + $0x68] sm:$0xff]
    %v404 = vld [vmem:[%s389 + $0x70] sm:$0xff]
    %v405 = vld [vmem:[%s389 + $0x78] sm:$0xff]
    %406 = vmatprep.subr.mxu0 0.0
    %407 = vmatpush1.msra.mxu0 %v405
    %408 = vmatprep.subr.mxu0 0.0
    %409 = vmatpush1.msra.mxu0 %v404
    %410 = vmatprep.subr.mxu0 0.0
    %411 = vmatpush1.msra.mxu0 %v403
    %412 = vmatprep.subr.mxu0 0.0
    %413 = vmatpush1.msra.mxu0 %v402
    %414 = vmatprep.subr.mxu0 0.0
    %415 = vmatpush1.msra.mxu0 %v401
    %416 = vmatprep.subr.mxu0 0.0
    %417 = vmatpush1.msra.mxu0 %v400
    %418 = vmatprep.subr.mxu0 0.0
    %419 = vmatpush1.msra.mxu0 %v399
    %420 = vmatprep.subr.mxu0 0.0
    %421 = vmatpush1.msra.mxu0 %v398
    %422 = vmatprep.subr.mxu0 0.0
    %423 = vmatpush1.msra.mxu0 %v397
    %424 = vmatprep.subr.mxu0 0.0
    %425 = vmatpush1.msra.mxu0 %v396
    %426 = vmatprep.subr.mxu0 0.0
    %427 = vmatpush1.msra.mxu0 %v395
    %428 = vmatprep.subr.mxu0 0.0
    %429 = vmatpush1.msra.mxu0 %v394
    %430 = vmatprep.subr.mxu0 0.0
    %431 = vmatpush1.msra.mxu0 %v393
    %432 = vmatprep.subr.mxu0 0.0
    %433 = vmatpush1.msra.mxu0 %v392
    %434 = vmatprep.subr.mxu0 0.0
    %435 = vmatpush1.msra.mxu0 %v391
    %436 = vmatprep.subr.mxu0 0.0
    %437 = vmatpush1.msra.mxu0 %v390
    %438 = vmatprep.subr.mxu0 0.0
    %439 = vmatpush2.msra.mxu0 0.0
    %440 = vmatprep.subr.mxu0 0.0
    %441 = vmatpush2.msra.mxu0 0.0
    %442 = vmatprep.subr.mxu0 0.0
    %443 = vmatpush2.msra.mxu0 0.0
    %444 = vmatprep.subr.mxu0 0.0
    %445 = vmatpush2.msra.mxu0 0.0
    %446 = vmatprep.subr.mxu0 0.0
    %447 = vmatpush2.msra.mxu0 0.0
    %448 = vmatprep.subr.mxu0 0.0
    %449 = vmatpush2.msra.mxu0 0.0
    %450 = vmatprep.subr.mxu0 0.0
    %451 = vmatpush2.msra.mxu0 0.0
    %452 = vmatprep.subr.mxu0 0.0
    %453 = vmatpush2.msra.mxu0 0.0
    %454 = vmatprep.subr.mxu0 0.0
    %455 = vmatpush2.msra.mxu0 0.0
    %456 = vmatprep.subr.mxu0 0.0
    %457 = vmatpush2.msra.mxu0 0.0
    %458 = vmatprep.subr.mxu0 0.0
    %459 = vmatpush2.msra.mxu0 0.0
    %460 = vmatprep.subr.mxu0 0.0
    %461 = vmatpush2.msra.mxu0 0.0
    %462 = vmatprep.subr.mxu0 0.0
    %463 = vmatpush2.msra.mxu0 0.0
    %464 = vmatprep.subr.mxu0 0.0
    %465 = vmatpush2.msra.mxu0 0.0
    %466 = vmatprep.subr.mxu0 0.0
    %467 = vmatpush2.msra.mxu0 0.0
    %468 = vmatprep.subr.mxu0 0.0
    %469 = vmatpush2.msra.mxu0 0.0
    %470 = vmatprep.mubr.f32.mxu0 0.0
    %471 = vmatmul.mubr.f32.gmra.mxu0 %v387
    %v472 = vpop.f32.mrf.mxu0
    %v473 = vadd.f32 0.0, %v472
    %v474 = vpop.f32.mrf.mxu0
    %475 = vmatprep.mubr.f32.mxu0 0.0
    %476 = vmatmul.mubr.f32.gmra.mxu0 %v388
    %v477 = vpop.f32.mrf.mxu0
    %v478 = vadd.f32 0.0, %v477
    %v479 = vpop.f32.mrf.mxu0
    %480 = vdwg.mxu0
    %s481 = scalar_lea.vmem %s4, 2
    %v482 = vld [vmem:[%s481] sm:$0x1]
    %v484 = vlaneseq
    %v485 = vshrl.u32 %v484, 7
    %v486 = vsub.s32 0, %v485
    %v487 = vrot.slane %v482, %v486
    %489 = vmatprep.subr.mxu0 0.0
    %490 = vmatpush1.msra.mxu0 0.0
    %491 = vmatprep.subr.mxu0 0.0
    %492 = vmatpush1.msra.mxu0 0.0
    %493 = vmatprep.subr.mxu0 0.0
    %494 = vmatpush1.msra.mxu0 0.0
    %495 = vmatprep.subr.mxu0 0.0
    %496 = vmatpush1.msra.mxu0 0.0
    %497 = vmatprep.subr.mxu0 0.0
    %498 = vmatpush1.msra.mxu0 0.0
    %499 = vmatprep.subr.mxu0 0.0
    %500 = vmatpush1.msra.mxu0 0.0
    %501 = vmatprep.subr.mxu0 0.0
    %502 = vmatpush1.msra.mxu0 0.0
    %503 = vmatprep.subr.mxu0 0.0
    %504 = vmatpush1.msra.mxu0 0.0
    %505 = vmatprep.subr.mxu0 0.0
    %506 = vmatpush1.msra.mxu0 0.0
    %507 = vmatprep.subr.mxu0 0.0
    %508 = vmatpush1.msra.mxu0 0.0
    %509 = vmatprep.subr.mxu0 0.0
    %510 = vmatpush1.msra.mxu0 0.0
    %511 = vmatprep.subr.mxu0 0.0
    %512 = vmatpush1.msra.mxu0 0.0
    %513 = vmatprep.subr.mxu0 0.0
    %514 = vmatpush1.msra.mxu0 0.0
    %515 = vmatprep.subr.mxu0 0.0
    %516 = vmatpush1.msra.mxu0 0.0
    %517 = vmatprep.subr.mxu0 0.0
    %518 = vmatpush1.msra.mxu0 %v478
    %519 = vmatprep.subr.mxu0 0.0
    %520 = vmatpush1.msra.mxu0 %v473
    %521 = vmatprep.subr.mxu0 0.0
    %522 = vmatpush2.msra.mxu0 0.0
    %523 = vmatprep.subr.mxu0 0.0
    %524 = vmatpush2.msra.mxu0 0.0
    %525 = vmatprep.subr.mxu0 0.0
    %526 = vmatpush2.msra.mxu0 0.0
    %527 = vmatprep.subr.mxu0 0.0
    %528 = vmatpush2.msra.mxu0 0.0
    %529 = vmatprep.subr.mxu0 0.0
    %530 = vmatpush2.msra.mxu0 0.0
    %531 = vmatprep.subr.mxu0 0.0
    %532 = vmatpush2.msra.mxu0 0.0
    %533 = vmatprep.subr.mxu0 0.0
    %534 = vmatpush2.msra.mxu0 0.0
    %535 = vmatprep.subr.mxu0 0.0
    %536 = vmatpush2.msra.mxu0 0.0
    %537 = vmatprep.subr.mxu0 0.0
    %538 = vmatpush2.msra.mxu0 0.0
    %539 = vmatprep.subr.mxu0 0.0
    %540 = vmatpush2.msra.mxu0 0.0
    %541 = vmatprep.subr.mxu0 0.0
    %542 = vmatpush2.msra.mxu0 0.0
    %543 = vmatprep.subr.mxu0 0.0
    %544 = vmatpush2.msra.mxu0 0.0
    %545 = vmatprep.subr.mxu0 0.0
    %546 = vmatpush2.msra.mxu0 0.0
    %547 = vmatprep.subr.mxu0 0.0
    %548 = vmatpush2.msra.mxu0 0.0
    %549 = vmatprep.subr.mxu0 0.0
    %550 = vmatpush2.msra.mxu0 0.0
    %551 = vmatprep.subr.mxu0 0.0
    %552 = vmatpush2.msra.mxu0 0.0
    %553 = vmatprep.mubr.f32.mxu0 0.0
    %554 = vmatmul.mubr.f32.gmra.mxu0 %v41
    %v555 = vpop.f32.mrf.mxu0
    %v556 = vadd.f32 %v487, %v555
    %v557 = vpop.f32.mrf.mxu0
    %558 = vmatprep.mubr.f32.mxu0 0.0
    %559 = vmatmul.mubr.f32.gmra.mxu0 %v44
    %v560 = vpop.f32.mrf.mxu0
    %v561 = vadd.f32 %v487, %v560
    %v562 = vpop.f32.mrf.mxu0
    %563 = vdwg.mxu0
    %564 = vst [vmem:[#allocation5] sm:$0xff] %v556
    %565 = vst [vmem:[#allocation5 + $0x8] sm:$0xff] %v561
    // Predicated region
    $region26: #{jumpk_gnn_forward.1} parent=1 // pred_check
      _
    $region27: #{jumpk_gnn_forward.1} parent=1 // pred_check_branch
      %567 = sbr.rel (0) target = $region29
    $region28: #{jumpk_gnn_forward.1} parent=1 // pred_region
      %s569 = ssub.s32 256, 256
      %570 = vsyncadd [#allocation4], %s569
      %s571 = sshll.u32 [#allocation5], 4
      %s572 = int_to_ptr.vmem [resolvable:$true] %s571
      %577 = dma.vmem_to_hbm [thread:$0]  %s572, 256, %s5, [#allocation4], 128, 128, 8
    $region29: #{jumpk_gnn_forward.1} parent=1 // pred_fallthru
      _
    // Predicated region
    $region30: #{jumpk_gnn_forward.1} parent=1 // pred_check
      _
    $region31: #{jumpk_gnn_forward.1} parent=1 // pred_check_branch
      %579 = sbr.rel (0) target = $region33
    $region32: #{jumpk_gnn_forward.1} parent=1 // pred_region
      %580 = dma.done [#allocation4], 256
    $region33: #{jumpk_gnn_forward.1} parent=1 // pred_fallthru
      _
    %581 = vsyncpa [#allocation3], 1
    %582 = vsyncpa [#allocation4], 1

</llo_original>
